<compile_context>
chip_gen: v7x
topology: tpu7x:2x2x1
jax: 0.10.0
libtpu: 0.0.40
codegen_flags: <defaults>
</compile_context>

<pallas_src>
import jax
import jax.numpy as jnp
from jax import lax
from jax.experimental import pallas as pl
from jax.experimental.pallas import tpu as pltpu

INPUT_DIM = 10
HIDDEN_DIM = 20
OUTPUT_DIM = 2
SHARED_DIM = 10
LN_EPS = 1e-5

# weight-slab row layout (row starts 8-aligned), 40 lanes wide
R_W1, R_WF, R_CW = 0, 24, 64          # W1 (20 rows), folded W2@FW (40 rows), CW (10 rows)
W_ROWS, W_COLS = 80, 40

# bias / LayerNorm-param lane layout, one (1, 128) row
B_B1, B_FB, B_LNG, B_LNB, B_CB = 0, 40, 50, 60, 70
B_COLS = 128


def _model_kernel(v_ref, t_ref, lab_ref, w_ref, b_ref, pred_ref, fused_ref, nll_ref):
    v = v_ref[...]                                          # (TB, 10)
    t = t_ref[...]                                          # (TB, 10)
    lab = lab_ref[...]                                      # (TB, 1) int32
    tb = v.shape[0]

    # static views into the packed parameter slabs (VMEM-resident)
    w1 = w_ref[R_W1:R_W1 + 2 * INPUT_DIM, :]                # (20, 40) blk-diag layer 1
    wf = w_ref[R_WF:R_WF + 2 * HIDDEN_DIM, 0:SHARED_DIM]    # (40, 10) folded W2 @ FW
    cw = w_ref[R_CW:R_CW + SHARED_DIM, 0:OUTPUT_DIM]        # (10, 2)  classifier

    b1 = b_ref[:, B_B1:B_B1 + 2 * HIDDEN_DIM]
    fb = b_ref[:, B_FB:B_FB + SHARED_DIM]
    lng = b_ref[:, B_LNG:B_LNG + SHARED_DIM]
    lnb = b_ref[:, B_LNB:B_LNB + SHARED_DIM]
    cb = b_ref[:, B_CB:B_CB + OUTPUT_DIM]

    # both towers, layer 1, in one block-diagonal matmul (cols 0:20 vision, 20:40 text)
    x = jnp.concatenate([v, t], axis=-1)                                     # (TB, 20)
    h = jnp.maximum(
        jnp.dot(x, w1, preferred_element_type=jnp.float32) + b1, 0.0)        # (TB, 40)

    # layer 2 + fusion Linear folded into one matmul (no nonlinearity between them)
    comb = jnp.dot(h, wf, preferred_element_type=jnp.float32) + fb           # (TB, 10)

    # LayerNorm(shared_dim), biased variance, eps = 1e-5, then ReLU
    mean = jnp.mean(comb, axis=-1, keepdims=True)
    cen = comb - mean
    var = jnp.mean(cen * cen, axis=-1, keepdims=True)
    fused = jnp.maximum(cen * lax.rsqrt(var + LN_EPS) * lng + lnb, 0.0)      # (TB, 10)

    # classifier
    pred = jnp.dot(fused, cw, preferred_element_type=jnp.float32) + cb       # (TB, 2)

    # per-row NLL (batch mean is done in the wrapper so tiles stay independent)
    m = jnp.max(pred, axis=-1, keepdims=True)
    lse = m + jnp.log(jnp.sum(jnp.exp(pred - m), axis=-1, keepdims=True))
    onehot = (lax.broadcasted_iota(jnp.int32, (tb, OUTPUT_DIM), 1) == lab
              ).astype(jnp.float32)
    nll = lse - jnp.sum(onehot * pred, axis=-1, keepdims=True)               # (TB, 1)

    pred_ref[...] = pred
    fused_ref[...] = fused
    nll_ref[...] = nll


def init_params(key,
                input_dim=INPUT_DIM, hidden_dim=HIDDEN_DIM,
                output_dim=OUTPUT_DIM, shared_dim=SHARED_DIM):
    """PyTorch-style uniform(-1/sqrt(fan_in), 1/sqrt(fan_in)) init.
    Weights are stored as (in_features, out_features)."""
    def linear(k, fin, fout):
        kw, kb = jax.random.split(k)
        bound = 1.0 / jnp.sqrt(jnp.float32(fin))
        w = jax.random.uniform(kw, (fin, fout), jnp.float32, -bound, bound)
        b = jax.random.uniform(kb, (1, fout), jnp.float32, -bound, bound)
        return w, b

    keys = jax.random.split(key, 6)
    p = {}
    p['v_w1'], p['v_b1'] = linear(keys[0], input_dim, hidden_dim)
    p['v_w2'], p['v_b2'] = linear(keys[1], hidden_dim, hidden_dim)
    p['t_w1'], p['t_b1'] = linear(keys[2], input_dim, hidden_dim)
    p['t_w2'], p['t_b2'] = linear(keys[3], hidden_dim, hidden_dim)
    p['f_w'], p['f_b'] = linear(keys[4], 2 * hidden_dim, shared_dim)   # unsplit (40, 10)
    p['ln_g'] = jnp.ones((1, shared_dim), jnp.float32)
    p['ln_b'] = jnp.zeros((1, shared_dim), jnp.float32)
    p['c_w'], p['c_b'] = linear(keys[5], shared_dim, output_dim)
    return p


def pack_params(p):
    """Pack all weights into one (80, 40) slab and all bias/LN params into one
    (1, 128) row.  Layer-1 weights are laid out block-diagonally; the layer-2
    block-diagonal and the fusion Linear are pre-multiplied into one (40, 10)
    matrix (exact, since there is no nonlinearity between them)."""
    H, S, I, O = HIDDEN_DIM, SHARED_DIM, INPUT_DIM, OUTPUT_DIM

    # fold: blockdiag(v_w2, t_w2) @ f_w  and  concat(v_b2, t_b2) @ f_w + f_b
    wf_v = p['v_w2'] @ p['f_w'][:H, :]                              # (H, S)
    wf_t = p['t_w2'] @ p['f_w'][H:, :]                              # (H, S)
    bf = p['v_b2'] @ p['f_w'][:H, :] + p['t_b2'] @ p['f_w'][H:, :] + p['f_b']

    w = jnp.zeros((W_ROWS, W_COLS), jnp.float32)
    # layer 1 block-diagonal: rows = [vision_in | text_in], cols = [v_hidden | t_hidden]
    w = w.at[R_W1:R_W1 + I, 0:H].set(p['v_w1'])
    w = w.at[R_W1 + I:R_W1 + 2 * I, H:2 * H].set(p['t_w1'])
    # folded layer-2 + fusion
    w = w.at[R_WF:R_WF + H, 0:S].set(wf_v)
    w = w.at[R_WF + H:R_WF + 2 * H, 0:S].set(wf_t)
    # classifier
    w = w.at[R_CW:R_CW + S, 0:O].set(p['c_w'])

    b = jnp.zeros((1, B_COLS), jnp.float32)
    b = b.at[:, B_B1:B_B1 + H].set(p['v_b1'])
    b = b.at[:, B_B1 + H:B_B1 + 2 * H].set(p['t_b1'])
    b = b.at[:, B_FB:B_FB + S].set(bf)
    b = b.at[:, B_LNG:B_LNG + S].set(p['ln_g'])
    b = b.at[:, B_LNB:B_LNB + S].set(p['ln_b'])
    b = b.at[:, B_CB:B_CB + O].set(p['c_b'])
    return w, b


def simple_baseline_forward(params, vision, text, labels, *, tile_b=None):
    """Returns (pred, fused_representation, loss) — mirrors the torch forward
    with 'labels' present in the batch dict."""
    B = vision.shape[0]
    Bp8 = ((B + 7) // 8) * 8
    if tile_b is None:
        if Bp8 <= 128:
            # tiny batches: one tile, no per-step pipeline overhead
            tile_b = Bp8
        else:
            # moderate batches: >= 2 tiles so the 'parallel' axis feeds both
            # v7x TensorCores; large batches: 1024-row tiles (VMEM per tile is
            # ~100 KiB, far below any limit) to amortize grid-step overhead.
            half = ((Bp8 + 15) // 16) * 8        # ceil(Bp8/2) rounded up to 8
            tile_b = min(1024, half)
    tile_b = max(8, ((tile_b + 7) // 8) * 8)
    num_tiles = pl.cdiv(B, tile_b)
    Bp = num_tiles * tile_b

    vision = vision.astype(jnp.float32)
    text = text.astype(jnp.float32)
    labels2d = labels.astype(jnp.int32).reshape(B, 1)
    if Bp != B:  # pad the batch up to a whole number of tiles
        pad = Bp - B
        vision = jnp.pad(vision, ((0, pad), (0, 0)))
        text = jnp.pad(text, ((0, pad), (0, 0)))
        labels2d = jnp.pad(labels2d, ((0, pad), (0, 0)))

    w_slab, b_row = pack_params(params)

    pred, fused, nll = pl.pallas_call(
        _model_kernel,
        out_shape=(
            jax.ShapeDtypeStruct((Bp, OUTPUT_DIM), jnp.float32),
            jax.ShapeDtypeStruct((Bp, SHARED_DIM), jnp.float32),
            jax.ShapeDtypeStruct((Bp, 1), jnp.float32),
        ),
        grid=(num_tiles,),
        in_specs=[
            pl.BlockSpec((tile_b, INPUT_DIM), lambda i: (i, 0)),   # vision tile
            pl.BlockSpec((tile_b, INPUT_DIM), lambda i: (i, 0)),   # text tile
            pl.BlockSpec((tile_b, 1), lambda i: (i, 0)),           # labels tile
            pl.BlockSpec((W_ROWS, W_COLS), lambda i: (0, 0)),      # resident weight slab
            pl.BlockSpec((1, B_COLS), lambda i: (0, 0)),           # resident bias row
        ],
        out_specs=[
            pl.BlockSpec((tile_b, OUTPUT_DIM), lambda i: (i, 0)),
            pl.BlockSpec((tile_b, SHARED_DIM), lambda i: (i, 0)),
            pl.BlockSpec((tile_b, 1), lambda i: (i, 0)),
        ],
        compiler_params=pltpu.CompilerParams(
            dimension_semantics=("parallel",)),                    # megacore / v7x 2-TC
    )(vision, text, labels2d, w_slab, b_row)

    if Bp != B:
        pred, fused, nll = pred[:B], fused[:B], nll[:B]
    loss = jnp.mean(nll[:, 0])          # batch mean done outside the kernel
    # TODO(synk): out-of-range labels yield a silently wrong per-row loss here
    # (one-hot of 0) instead of raising like torch.nn.functional.cross_entropy.
    return pred, fused, loss


def _reference_forward(params, vision, text, labels):
    """Plain-JAX reference (mirrors the PyTorch module) for a sanity check."""
    vh = jnp.maximum(vision @ params['v_w1'] + params['v_b1'], 0.0)
    vf = vh @ params['v_w2'] + params['v_b2']
    th = jnp.maximum(text @ params['t_w1'] + params['t_b1'], 0.0)
    tf = th @ params['t_w2'] + params['t_b2']
    comb = jnp.concatenate([vf, tf], axis=-1) @ params['f_w'] + params['f_b']
    mean = jnp.mean(comb, axis=-1, keepdims=True)
    var = jnp.mean((comb - mean) ** 2, axis=-1, keepdims=True)
    ln = (comb - mean) / jnp.sqrt(var + LN_EPS) * params['ln_g'] + params['ln_b']
    fused = jnp.maximum(ln, 0.0)
    pred = fused @ params['c_w'] + params['c_b']
    logp = jax.nn.log_softmax(pred, axis=-1)
    loss = -jnp.mean(jnp.take_along_axis(logp, labels[:, None], axis=-1))
    return pred, fused, loss


if __name__ == "__main__":
    key = jax.random.PRNGKey(0)
    k_params, k_v, k_t, k_l = jax.random.split(key, 4)

    B = 12  # deliberately not a multiple of 8 (exercises batch padding)
    params = init_params(k_params)
    vision = jax.random.normal(k_v, (B, INPUT_DIM), jnp.float32)
    text = jax.random.normal(k_t, (B, INPUT_DIM), jnp.float32)
    labels = jax.random.randint(k_l, (B,), 0, OUTPUT_DIM, jnp.int32)

    pred, fused, loss = jax.block_until_ready(
        simple_baseline_forward(params, vision, text, labels))

    # sanity check against the plain-JAX reference (validates the W2@FW fold)
    pred_ref, fused_ref, loss_ref = _reference_forward(params, vision, text, labels)
    assert jnp.allclose(pred, pred_ref, atol=1e-4), "pred mismatch"
    assert jnp.allclose(fused, fused_ref, atol=1e-4), "fused mismatch"
    assert jnp.allclose(loss, loss_ref, atol=1e-4), "loss mismatch"

    print("KERNEL_OK")
</pallas_src>

<mosaic_0001>
module attributes {stable_mosaic.version = 11 : i64} {
  func.func @_model_kernel(%arg0: i32, %arg1: memref<16x10xf32, #tpu.memory_space<vmem>>, %arg2: memref<16x10xf32, #tpu.memory_space<vmem>>, %arg3: memref<16x1xi32, #tpu.memory_space<vmem>>, %arg4: memref<80x40xf32, #tpu.memory_space<vmem>>, %arg5: memref<1x128xf32, #tpu.memory_space<vmem>>, %arg6: memref<16x2xf32, #tpu.memory_space<vmem>>, %arg7: memref<16x10xf32, #tpu.memory_space<vmem>>, %arg8: memref<16x1xf32, #tpu.memory_space<vmem>>) attributes {dimension_semantics = [#tpu.dimension_semantics<parallel>], iteration_bounds = array<i64: 1>, scalar_prefetch = 0 : i64, scratch_operands = 0 : i64, tpu.core_type = #tpu.core_type<tc>, window_params = [{transform_indices = @transform_0, window_bounds = array<i64: 16, 10>}, {transform_indices = @transform_1, window_bounds = array<i64: 16, 10>}, {transform_indices = @transform_2, window_bounds = array<i64: 16, 1>}, {pipeline_mode = #tpu.pipeline_mode<synchronous>, transform_indices = @transform_3, window_bounds = array<i64: 80, 40>}, {pipeline_mode = #tpu.pipeline_mode<synchronous>, transform_indices = @transform_4, window_bounds = array<i64: 1, 128>}, {transform_indices = @transform_5, window_bounds = array<i64: 16, 2>}, {transform_indices = @transform_6, window_bounds = array<i64: 16, 10>}, {transform_indices = @transform_7, window_bounds = array<i64: 16, 1>}]} {
    %c0 = arith.constant 0 : index
    %c0_0 = arith.constant 0 : index
    %0 = vector.load %arg1[%c0, %c0_0] : memref<16x10xf32, #tpu.memory_space<vmem>>, vector<16x10xf32>
    %c0_1 = arith.constant 0 : index
    %c0_2 = arith.constant 0 : index
    %1 = vector.load %arg2[%c0_1, %c0_2] : memref<16x10xf32, #tpu.memory_space<vmem>>, vector<16x10xf32>
    %c0_3 = arith.constant 0 : index
    %c0_4 = arith.constant 0 : index
    %2 = vector.load %arg3[%c0_3, %c0_4] : memref<16x1xi32, #tpu.memory_space<vmem>>, vector<16x1xi32>
    %c0_5 = arith.constant 0 : index
    %c0_6 = arith.constant 0 : index
    %3 = vector.load %arg4[%c0_5, %c0_6] : memref<80x40xf32, #tpu.memory_space<vmem>>, vector<20x40xf32>
    %c24 = arith.constant 24 : index
    %c0_7 = arith.constant 0 : index
    %4 = vector.load %arg4[%c24, %c0_7] : memref<80x40xf32, #tpu.memory_space<vmem>>, vector<40x10xf32>
    %c64 = arith.constant 64 : index
    %c0_8 = arith.constant 0 : index
    %5 = vector.load %arg4[%c64, %c0_8] : memref<80x40xf32, #tpu.memory_space<vmem>>, vector<10x2xf32>
    %c0_9 = arith.constant 0 : index
    %c0_10 = arith.constant 0 : index
    %6 = vector.load %arg5[%c0_9, %c0_10] : memref<1x128xf32, #tpu.memory_space<vmem>>, vector<1x40xf32>
    %c0_11 = arith.constant 0 : index
    %c40 = arith.constant 40 : index
    %7 = vector.load %arg5[%c0_11, %c40] : memref<1x128xf32, #tpu.memory_space<vmem>>, vector<1x10xf32>
    %c0_12 = arith.constant 0 : index
    %c50 = arith.constant 50 : index
    %8 = vector.load %arg5[%c0_12, %c50] : memref<1x128xf32, #tpu.memory_space<vmem>>, vector<1x10xf32>
    %c0_13 = arith.constant 0 : index
    %c60 = arith.constant 60 : index
    %9 = vector.load %arg5[%c0_13, %c60] : memref<1x128xf32, #tpu.memory_space<vmem>>, vector<1x10xf32>
    %c0_14 = arith.constant 0 : index
    %c70 = arith.constant 70 : index
    %10 = vector.load %arg5[%c0_14, %c70] : memref<1x128xf32, #tpu.memory_space<vmem>>, vector<1x2xf32>
    %11 = tpu.concatenate %0, %1 in 1 : vector<16x10xf32>, vector<16x10xf32> -> vector<16x20xf32>
    %cst = arith.constant dense<0.000000e+00> : vector<16x40xf32>
    %12 = tpu.matmul %11, %3, %cst {dimension_numbers = #tpu.dot_dimension_numbers<[1], [0], [0], [1], [0, 0, 1, 1], [], []>} : vector<16x20xf32>, vector<20x40xf32>, vector<16x40xf32> -> vector<16x40xf32>
    %13 = vector.broadcast %6 : vector<1x40xf32> to vector<16x40xf32>
    %14 = arith.addf %12, %13 : vector<16x40xf32>
    %cst_15 = arith.constant 0.000000e+00 : f32
    %15 = vector.broadcast %cst_15 : f32 to vector<16x40xf32>
    %16 = arith.maximumf %14, %15 : vector<16x40xf32>
    %cst_16 = arith.constant dense<0.000000e+00> : vector<16x10xf32>
    %17 = tpu.matmul %16, %4, %cst_16 {dimension_numbers = #tpu.dot_dimension_numbers<[1], [0], [0], [1], [0, 0, 1, 1], [], []>} : vector<16x40xf32>, vector<40x10xf32>, vector<16x10xf32> -> vector<16x10xf32>
    %18 = vector.broadcast %7 : vector<1x10xf32> to vector<16x10xf32>
    %19 = arith.addf %17, %18 : vector<16x10xf32>
    %cst_17 = arith.constant dense<0.000000e+00> : vector<16xf32>
    %20 = vector.multi_reduction <add>, %19, %cst_17 [1] : vector<16x10xf32> to vector<16xf32>
    %21 = vector.shape_cast %20 : vector<16xf32> to vector<16x1xf32>
    %cst_18 = arith.constant 1.000000e+01 : f32
    %22 = vector.broadcast %cst_18 : f32 to vector<16x1xf32>
    %23 = arith.divf %21, %22 : vector<16x1xf32>
    %24 = vector.broadcast %23 : vector<16x1xf32> to vector<16x10xf32>
    %25 = arith.subf %19, %24 : vector<16x10xf32>
    %26 = arith.mulf %25, %25 : vector<16x10xf32>
    %cst_19 = arith.constant dense<0.000000e+00> : vector<16xf32>
    %27 = vector.multi_reduction <add>, %26, %cst_19 [1] : vector<16x10xf32> to vector<16xf32>
    %28 = vector.shape_cast %27 : vector<16xf32> to vector<16x1xf32>
    %cst_20 = arith.constant 1.000000e+01 : f32
    %29 = vector.broadcast %cst_20 : f32 to vector<16x1xf32>
    %30 = arith.divf %28, %29 : vector<16x1xf32>
    %cst_21 = arith.constant 9.99999974E-6 : f32
    %31 = vector.broadcast %cst_21 : f32 to vector<16x1xf32>
    %32 = arith.addf %30, %31 : vector<16x1xf32>
    %33 = math.rsqrt %32 : vector<16x1xf32>
    %34 = vector.broadcast %33 : vector<16x1xf32> to vector<16x10xf32>
    %35 = arith.mulf %25, %34 : vector<16x10xf32>
    %36 = vector.broadcast %8 : vector<1x10xf32> to vector<16x10xf32>
    %37 = arith.mulf %35, %36 : vector<16x10xf32>
    %38 = vector.broadcast %9 : vector<1x10xf32> to vector<16x10xf32>
    %39 = arith.addf %37, %38 : vector<16x10xf32>
    %cst_22 = arith.constant 0.000000e+00 : f32
    %40 = vector.broadcast %cst_22 : f32 to vector<16x10xf32>
    %41 = arith.maximumf %39, %40 : vector<16x10xf32>
    %cst_23 = arith.constant dense<0.000000e+00> : vector<16x2xf32>
    %42 = tpu.matmul %41, %5, %cst_23 {dimension_numbers = #tpu.dot_dimension_numbers<[1], [0], [0], [1], [0, 0, 1, 1], [], []>} : vector<16x10xf32>, vector<10x2xf32>, vector<16x2xf32> -> vector<16x2xf32>
    %43 = vector.broadcast %10 : vector<1x2xf32> to vector<16x2xf32>
    %44 = arith.addf %42, %43 : vector<16x2xf32>
    %cst_24 = arith.constant dense<0xFF800000> : vector<16xf32>
    %45 = vector.multi_reduction <maximumf>, %44, %cst_24 [1] : vector<16x2xf32> to vector<16xf32>
    %46 = vector.shape_cast %45 : vector<16xf32> to vector<16x1xf32>
    %47 = vector.broadcast %46 : vector<16x1xf32> to vector<16x2xf32>
    %48 = arith.subf %44, %47 : vector<16x2xf32>
    %49 = math.exp %48 : vector<16x2xf32>
    %cst_25 = arith.constant dense<0.000000e+00> : vector<16xf32>
    %50 = vector.multi_reduction <add>, %49, %cst_25 [1] : vector<16x2xf32> to vector<16xf32>
    %51 = vector.shape_cast %50 : vector<16xf32> to vector<16x1xf32>
    %52 = math.log %51 : vector<16x1xf32>
    %53 = arith.addf %46, %52 : vector<16x1xf32>
    %54 = tpu.iota {dimensions = array<i32: 1>} : vector<16x2xi32>
    %55 = vector.broadcast %2 : vector<16x1xi32> to vector<16x2xi32>
    %56 = arith.cmpi eq, %54, %55 : vector<16x2xi32>
    %57 = arith.extui %56 : vector<16x2xi1> to vector<16x2xi32>
    %58 = arith.sitofp %57 : vector<16x2xi32> to vector<16x2xf32>
    %59 = arith.mulf %58, %44 : vector<16x2xf32>
    %cst_26 = arith.constant dense<0.000000e+00> : vector<16xf32>
    %60 = vector.multi_reduction <add>, %59, %cst_26 [1] : vector<16x2xf32> to vector<16xf32>
    %61 = vector.shape_cast %60 : vector<16xf32> to vector<16x1xf32>
    %62 = arith.subf %53, %61 : vector<16x1xf32>
    %c0_27 = arith.constant 0 : index
    %c0_28 = arith.constant 0 : index
    %63 = vector.load %arg6[%c0_27, %c0_28] : memref<16x2xf32, #tpu.memory_space<vmem>>, vector<16x2xf32>
    tpu.vector_store %arg6[%c0_27, %c0_28], %44 {strides = array<i32>} : memref<16x2xf32, #tpu.memory_space<vmem>>, vector<16x2xf32>,
    %c0_29 = arith.constant 0 : index
    %c0_30 = arith.constant 0 : index
    %64 = vector.load %arg7[%c0_29, %c0_30] : memref<16x10xf32, #tpu.memory_space<vmem>>, vector<16x10xf32>
    tpu.vector_store %arg7[%c0_29, %c0_30], %41 {strides = array<i32>} : memref<16x10xf32, #tpu.memory_space<vmem>>, vector<16x10xf32>,
    %c0_31 = arith.constant 0 : index
    %c0_32 = arith.constant 0 : index
    %65 = vector.load %arg8[%c0_31, %c0_32] : memref<16x1xf32, #tpu.memory_space<vmem>>, vector<16x1xf32>
    tpu.vector_store %arg8[%c0_31, %c0_32], %62 {strides = array<i32>} : memref<16x1xf32, #tpu.memory_space<vmem>>, vector<16x1xf32>,
    return
  }
  func.func @transform_0(%arg0: i32) -> (i32, i32) {
    %c0_i32 = arith.constant 0 : i32
    %c0_i32_0 = arith.constant 0 : i32
    return %arg0, %c0_i32 : i32, i32
  }
  func.func @transform_1(%arg0: i32) -> (i32, i32) {
    %c0_i32 = arith.constant 0 : i32
    %c0_i32_0 = arith.constant 0 : i32
    return %arg0, %c0_i32 : i32, i32
  }
  func.func @transform_2(%arg0: i32) -> (i32, i32) {
    %c0_i32 = arith.constant 0 : i32
    %c0_i32_0 = arith.constant 0 : i32
    return %arg0, %c0_i32 : i32, i32
  }
  func.func @transform_3(%arg0: i32) -> (i32, i32) {
    %c0_i32 = arith.constant 0 : i32
    %c0_i32_0 = arith.constant 0 : i32
    %c0_i32_1 = arith.constant 0 : i32
    return %c0_i32, %c0_i32_0 : i32, i32
  }
  func.func @transform_4(%arg0: i32) -> (i32, i32) {
    %c0_i32 = arith.constant 0 : i32
    %c0_i32_0 = arith.constant 0 : i32
    %c0_i32_1 = arith.constant 0 : i32
    return %c0_i32, %c0_i32_0 : i32, i32
  }
  func.func @transform_5(%arg0: i32) -> (i32, i32) {
    %c0_i32 = arith.constant 0 : i32
    %c0_i32_0 = arith.constant 0 : i32
    return %arg0, %c0_i32 : i32, i32
  }
  func.func @transform_6(%arg0: i32) -> (i32, i32) {
    %c0_i32 = arith.constant 0 : i32
    %c0_i32_0 = arith.constant 0 : i32
    return %arg0, %c0_i32 : i32, i32
  }
  func.func @transform_7(%arg0: i32) -> (i32, i32) {
    %c0_i32 = arith.constant 0 : i32
    %c0_i32_0 = arith.constant 0 : i32
    return %arg0, %c0_i32 : i32, i32
  }
}

</mosaic_0001>

<llo_original>
// kernel: tpu_custom_call.1
$region0: #{tpu_custom_call.1}
  #allocation0 [shape = 'u32[]', space=smem, size = 0x4, offset = 0x4, fixed_abs, tag = 'smem constant byte address 0x4 - core index']
  #allocation1 [shape = 'u32[144,128]{1,0:T(1,128)}', space=vmem, size = 0x12000, scoped, tag = 'internal scratch']
  %s0 = inlined_call_operand.vmem [shape: f32[16,10], index: 0, kind: input, shape index: {}]
  %s1 = inlined_call_operand.vmem [shape: f32[16,10], index: 1, kind: input, shape index: {}]
  %s2 = inlined_call_operand.vmem [shape: s32[16,1], index: 2, kind: input, shape index: {}]
  %s3 = inlined_call_operand.vmem [shape: f32[80,40], index: 3, kind: input, shape index: {}]
  %s4 = inlined_call_operand.vmem [shape: f32[1,128], index: 4, kind: input, shape index: {}]
  %s5 = inlined_call_operand.vmem [shape: f32[16,2], index: 5, kind: output, shape index: {0}]
  %s6 = inlined_call_operand.hbm [shape: f32[16,10], index: 6, kind: output, shape index: {1}]
  %s7 = inlined_call_operand.vmem [shape: f32[16,1], index: 7, kind: output, shape index: {2}]
  %8 = xla_tuple %s5, %s6, %s7
  %s9 = sld [smem:[#allocation0]]
  $region46: #{tpu_custom_call.1} parent=0
    _
  %s11 = ssub.s32 1, %s9
  %s12 = scalar_select 0, %s11, %s9
  $region1: #{tpu_custom_call.1} parent=0
    #allocation2 [shape = 'u8[8192]{0}', space=vmem, size = 0x2000, scoped, tag = 'output window, operand 1, single buffered']
    #allocation3 [shape = 's32[1]{0}', space=sflag, size = 0x4, scoped, tag = 'scoped memory for tpu_custom_call.1']
    %13 = vsyncpa [#allocation3], 0
    // Predicated region
    $region2: #{tpu_custom_call.1} parent=1 // pred_check
      _
    $region3: #{tpu_custom_call.1} parent=1 // pred_check_branch
      %15 = sbr.rel (0) target = $region5
    $region4: #{tpu_custom_call.1} parent=1 // pred_region
      _
    $region5: #{tpu_custom_call.1} parent=1 // pred_fallthru
      _
    // Predicated region
    $region6: #{tpu_custom_call.1} parent=1 // pred_check
      _
    $region7: #{tpu_custom_call.1} parent=1 // pred_check_branch
      %17 = sbr.rel (0) target = $region9
    $region8: #{tpu_custom_call.1} parent=1 // pred_region
      _
    $region9: #{tpu_custom_call.1} parent=1 // pred_fallthru
      _
    // Predicated region
    $region10: #{tpu_custom_call.1} parent=1 // pred_check
      _
    $region11: #{tpu_custom_call.1} parent=1 // pred_check_branch
      %19 = sbr.rel (0) target = $region13
    $region12: #{tpu_custom_call.1} parent=1 // pred_region
      _
    $region13: #{tpu_custom_call.1} parent=1 // pred_fallthru
      _
    // Predicated region
    $region14: #{tpu_custom_call.1} parent=1 // pred_check
      _
    $region15: #{tpu_custom_call.1} parent=1 // pred_check_branch
      %21 = sbr.rel (0) target = $region17
    $region16: #{tpu_custom_call.1} parent=1 // pred_region
      _
    $region17: #{tpu_custom_call.1} parent=1 // pred_fallthru
      _
    // Predicated region
    $region18: #{tpu_custom_call.1} parent=1 // pred_check
      _
    $region19: #{tpu_custom_call.1} parent=1 // pred_check_branch
      %23 = sbr.rel (0) target = $region21
    $region20: #{tpu_custom_call.1} parent=1 // pred_region
      _
    $region21: #{tpu_custom_call.1} parent=1 // pred_fallthru
      _
    %v24 = vld [vmem:[%s0] sm:$0xff]
    %v25 = vld [vmem:[%s0 + $0x8] sm:$0xff]
    %v26 = vld [vmem:[%s1] sm:$0xff]
    %v27 = vld [vmem:[%s1 + $0x8] sm:$0xff]
    %v28 = vld [vmem:[%s2] sm:$0xff]
    %v29 = vld [vmem:[%s2 + $0x8] sm:$0xff]
    %v30 = vld [vmem:[%s3] sm:$0xff]
    %v31 = vld [vmem:[%s3 + $0x8] sm:$0xff]
    %v32 = vld [vmem:[%s3 + $0x10] sm:$0xf]
    %v33 = vld [vmem:[%s3 + $0x18] sm:$0xff]
    %v34 = vld [vmem:[%s3 + $0x20] sm:$0xff]
    %v35 = vld [vmem:[%s3 + $0x28] sm:$0xff]
    %v36 = vld [vmem:[%s3 + $0x30] sm:$0xff]
    %v37 = vld [vmem:[%s3 + $0x38] sm:$0xff]
    %v38 = vld [vmem:[%s3 + $0x40] sm:$0xff]
    %v39 = vld [vmem:[%s3 + $0x48] sm:$0x3]
    %v40 = vld [vmem:[%s4] sm:$0x1]
    %43 = vrot.lane.b32.xlu0 %v26, 10
    %v44 = vpop.permute.xlu0 %43
    %45 = vrot.lane.b32.xlu0 %v27, 10
    %v46 = vpop.permute.xlu0 %45
    %vm49 = vcmask 80896
    %v50 = vsel %vm49, %v24, %v44
    %v51 = vsel %vm49, %v25, %v46
    %v53 = vlaneseq
    %v54 = vshrl.u32 %v53, 7
    %v55 = vsub.s32 0, %v54
    %v56 = vrot.slane %v40, %v55
    %vm58 = vcmask 162816
    %v60 = vsel %vm58, %v50, 0
    %v63 = vsel %vm58, %v51, 0
    %vm65 = vcmask 1043456
    %v67 = vsel %vm65, %v32, 0
    %69 = vmatprep.subr.mxu0 0.0
    %70 = vmatpush1.msra.mxu0 %v30
    %71 = vmatprep.subr.mxu0 0.0
    %72 = vmatpush1.msra.mxu0 %v31
    %73 = vmatprep.subr.mxu0 0.0
    %74 = vmatpush1.msra.mxu0 %v67
    %75 = vmatprep.subr.mxu0 0.0
    %76 = vmatpush1.msra.mxu0 0.0
    %77 = vmatprep.subr.mxu0 0.0
    %78 = vmatpush1.msra.mxu0 0.0
    %79 = vmatprep.subr.mxu0 0.0
    %80 = vmatpush1.msra.mxu0 0.0
    %81 = vmatprep.subr.mxu0 0.0
    %82 = vmatpush1.msra.mxu0 0.0
    %83 = vmatprep.subr.mxu0 0.0
    %84 = vmatpush1.msra.mxu0 0.0
    %85 = vmatprep.subr.mxu0 0.0
    %86 = vmatpush1.msra.mxu0 0.0
    %87 = vmatprep.subr.mxu0 0.0
    %88 = vmatpush1.msra.mxu0 0.0
    %89 = vmatprep.subr.mxu0 0.0
    %90 = vmatpush1.msra.mxu0 0.0
    %91 = vmatprep.subr.mxu0 0.0
    %92 = vmatpush1.msra.mxu0 0.0
    %93 = vmatprep.subr.mxu0 0.0
    %94 = vmatpush1.msra.mxu0 0.0
    %95 = vmatprep.subr.mxu0 0.0
    %96 = vmatpush1.msra.mxu0 0.0
    %97 = vmatprep.subr.mxu0 0.0
    %98 = vmatpush1.msra.mxu0 0.0
    %99 = vmatprep.subr.mxu0 0.0
    %100 = vmatpush1.msra.mxu0 0.0
    %101 = vmatprep.subr.mxu0 0.0
    %102 = vmatpush1.msra.mxu0 0.0
    %103 = vmatprep.subr.mxu0 0.0
    %104 = vmatpush1.msra.mxu0 0.0
    %105 = vmatprep.subr.mxu0 0.0
    %106 = vmatpush1.msra.mxu0 0.0
    %107 = vmatprep.subr.mxu0 0.0
    %108 = vmatpush1.msra.mxu0 0.0
    %109 = vmatprep.subr.mxu0 0.0
    %110 = vmatpush1.msra.mxu0 0.0
    %111 = vmatprep.subr.mxu0 0.0
    %112 = vmatpush1.msra.mxu0 0.0
    %113 = vmatprep.subr.mxu0 0.0
    %114 = vmatpush1.msra.mxu0 0.0
    %115 = vmatprep.subr.mxu0 0.0
    %116 = vmatpush1.msra.mxu0 0.0
    %117 = vmatprep.subr.mxu0 0.0
    %118 = vmatpush1.msra.mxu0 0.0
    %119 = vmatprep.subr.mxu0 0.0
    %120 = vmatpush1.msra.mxu0 0.0
    %121 = vmatprep.subr.mxu0 0.0
    %122 = vmatpush1.msra.mxu0 0.0
    %123 = vmatprep.subr.mxu0 0.0
    %124 = vmatpush1.msra.mxu0 0.0
    %125 = vmatprep.subr.mxu0 0.0
    %126 = vmatpush1.msra.mxu0 0.0
    %127 = vmatprep.subr.mxu0 0.0
    %128 = vmatpush1.msra.mxu0 0.0
    %129 = vmatprep.subr.mxu0 0.0
    %130 = vmatpush1.msra.mxu0 0.0
    %131 = vmatprep.subr.mxu0 0.0
    %132 = vmatpush1.msra.mxu0 0.0
    %133 = vmatprep.mubr.f32.mxu0 0.0
    %134 = vmatmul.mubr.f32.gmra.mrb[0].mxu0 %v60
    %v135 = vpop.f32.mrb[0].mxu0
    %v136 = vadd.f32 %v56, %v135
    %v137 = vpop.f32.mrb[0].mxu0
    %138 = vmatprep.mubr.f32.mxu0 0.0
    %139 = vmatmul.mubr.f32.gmra.mrb[0].mxu0 %v63
    %v140 = vpop.f32.mrb[0].mxu0
    %v141 = vadd.f32 %v56, %v140
    %v142 = vpop.f32.mrb[0].mxu0
    %143 = vdwg.mxu0
    %v144 = vmax.f32 %v136, 0.0
    %v145 = vmax.f32 %v141, 0.0
    %146 = vrot.lane.b32.xlu0 %v56, 88
    %v147 = vpop.permute.xlu0 %146
    %vm149 = vcmask 326656
    %v151 = vsel %vm149, %v144, 0
    %v154 = vsel %vm149, %v145, 0
    %156 = vmatprep.subr.mxu0 0.0
    %157 = vmatpush1.msra.mxu0 %v33
    %158 = vmatprep.subr.mxu0 0.0
    %159 = vmatpush1.msra.mxu0 %v34
    %160 = vmatprep.subr.mxu0 0.0
    %161 = vmatpush1.msra.mxu0 %v35
    %162 = vmatprep.subr.mxu0 0.0
    %163 = vmatpush1.msra.mxu0 %v36
    %164 = vmatprep.subr.mxu0 0.0
    %165 = vmatpush1.msra.mxu0 %v37
    %166 = vmatprep.subr.mxu0 0.0
    %167 = vmatpush1.msra.mxu0 0.0
    %168 = vmatprep.subr.mxu0 0.0
    %169 = vmatpush1.msra.mxu0 0.0
    %170 = vmatprep.subr.mxu0 0.0
    %171 = vmatpush1.msra.mxu0 0.0
    %172 = vmatprep.subr.mxu0 0.0
    %173 = vmatpush1.msra.mxu0 0.0
    %174 = vmatprep.subr.mxu0 0.0
    %175 = vmatpush1.msra.mxu0 0.0
    %176 = vmatprep.subr.mxu0 0.0
    %177 = vmatpush1.msra.mxu0 0.0
    %178 = vmatprep.subr.mxu0 0.0
    %179 = vmatpush1.msra.mxu0 0.0
    %180 = vmatprep.subr.mxu0 0.0
    %181 = vmatpush1.msra.mxu0 0.0
    %182 = vmatprep.subr.mxu0 0.0
    %183 = vmatpush1.msra.mxu0 0.0
    %184 = vmatprep.subr.mxu0 0.0
    %185 = vmatpush1.msra.mxu0 0.0
    %186 = vmatprep.subr.mxu0 0.0
    %187 = vmatpush1.msra.mxu0 0.0
    %188 = vmatprep.subr.mxu0 0.0
    %189 = vmatpush1.msra.mxu0 0.0
    %190 = vmatprep.subr.mxu0 0.0
    %191 = vmatpush1.msra.mxu0 0.0
    %192 = vmatprep.subr.mxu0 0.0
    %193 = vmatpush1.msra.mxu0 0.0
    %194 = vmatprep.subr.mxu0 0.0
    %195 = vmatpush1.msra.mxu0 0.0
    %196 = vmatprep.subr.mxu0 0.0
    %197 = vmatpush1.msra.mxu0 0.0
    %198 = vmatprep.subr.mxu0 0.0
    %199 = vmatpush1.msra.mxu0 0.0
    %200 = vmatprep.subr.mxu0 0.0
    %201 = vmatpush1.msra.mxu0 0.0
    %202 = vmatprep.subr.mxu0 0.0
    %203 = vmatpush1.msra.mxu0 0.0
    %204 = vmatprep.subr.mxu0 0.0
    %205 = vmatpush1.msra.mxu0 0.0
    %206 = vmatprep.subr.mxu0 0.0
    %207 = vmatpush1.msra.mxu0 0.0
    %208 = vmatprep.subr.mxu0 0.0
    %209 = vmatpush1.msra.mxu0 0.0
    %210 = vmatprep.subr.mxu0 0.0
    %211 = vmatpush1.msra.mxu0 0.0
    %212 = vmatprep.subr.mxu0 0.0
    %213 = vmatpush1.msra.mxu0 0.0
    %214 = vmatprep.subr.mxu0 0.0
    %215 = vmatpush1.msra.mxu0 0.0
    %216 = vmatprep.subr.mxu0 0.0
    %217 = vmatpush1.msra.mxu0 0.0
    %218 = vmatprep.subr.mxu0 0.0
    %219 = vmatpush1.msra.mxu0 0.0
    %220 = vmatprep.mubr.f32.mxu0 0.0
    %221 = vmatmul.mubr.f32.gmra.mrb[0].mxu0 %v151
    %v222 = vpop.f32.mrb[0].mxu0
    %v223 = vadd.f32 %v147, %v222
    %v224 = vpop.f32.mrb[0].mxu0
    %225 = vmatprep.mubr.f32.mxu0 0.0
    %226 = vmatmul.mubr.f32.gmra.mrb[0].mxu0 %v154
    %v227 = vpop.f32.mrb[0].mxu0
    %v228 = vadd.f32 %v147, %v227
    %v229 = vpop.f32.mrb[0].mxu0
    %230 = vdwg.mxu0
    %v231 = vsel %vm49, %v223, 0.0
    %232 = vadd.xlane.f32.xlu0 %v231
    %v233 = vpop.xlane.xlu0 %232
    %v234 = vsel %vm49, %v228, 0.0
    %235 = vadd.xlane.f32.xlu0 %v234
    %v236 = vpop.xlane.xlu0 %235
    %v237 = vrcp.pop 10.0
    %v238 = vmul.f32 %v233, %v237
    %v239 = vmul.f32 %v236, %v237
    %v240 = vsub.f32 %v223, %v238
    %v241 = vsub.f32 %v228, %v239
    %v242 = vmul.f32 %v240, %v240
    %v243 = vmul.f32 %v241, %v241
    %v244 = vsel %vm49, %v242, 0.0
    %245 = vadd.xlane.f32.xlu0 %v244
    %v246 = vpop.xlane.xlu0 %245
    %v247 = vsel %vm49, %v243, 0.0
    %248 = vadd.xlane.f32.xlu0 %v247
    %v249 = vpop.xlane.xlu0 %248
    %v250 = vmul.f32 %v246, %v237
    %v251 = vmul.f32 %v249, %v237
    %v252 = vadd.f32 %v250, 1e-05
    %v253 = vadd.f32 %v251, 1e-05
    %v254 = vrsqrt.pop %v252
    %v255 = vrsqrt.pop %v253
    %v256 = vmul.f32 %v240, %v254
    %v257 = vmul.f32 %v241, %v255
    %258 = vrot.lane.b32.xlu0 %v56, 78
    %v259 = vpop.permute.xlu0 %258
    %v261 = vmul.f32 %v256, %v259
    %v262 = vmul.f32 %v257, %v259
    %263 = vrot.lane.b32.xlu0 %v56, 68
    %v264 = vpop.permute.xlu0 %263
    %v266 = vadd.f32 %v261, %v264
    %v267 = vadd.f32 %v262, %v264
    %v268 = vmax.f32 %v266, 0.0
    %v269 = vmax.f32 %v267, 0.0
    %270 = vrot.lane.b32.xlu0 %v56, 58
    %v271 = vpop.permute.xlu0 %270
    %v274 = vsel %vm49, %v268, 0
    %v277 = vsel %vm49, %v269, 0
    %vm279 = vcmask 1041408
    %v281 = vsel %vm279, %v39, 0
    %283 = vmatprep.subr.mxu0 0.0
    %284 = vmatpush1.msra.mxu0 %v38
    %285 = vmatprep.subr.mxu0 0.0
    %286 = vmatpush1.msra.mxu0 %v281
    %287 = vmatprep.subr.mxu0 0.0
    %288 = vmatpush1.msra.mxu0 0.0
    %289 = vmatprep.subr.mxu0 0.0
    %290 = vmatpush1.msra.mxu0 0.0
    %291 = vmatprep.subr.mxu0 0.0
    %292 = vmatpush1.msra.mxu0 0.0
    %293 = vmatprep.subr.mxu0 0.0
    %294 = vmatpush1.msra.mxu0 0.0
    %295 = vmatprep.subr.mxu0 0.0
    %296 = vmatpush1.msra.mxu0 0.0
    %297 = vmatprep.subr.mxu0 0.0
    %298 = vmatpush1.msra.mxu0 0.0
    %299 = vmatprep.subr.mxu0 0.0
    %300 = vmatpush1.msra.mxu0 0.0
    %301 = vmatprep.subr.mxu0 0.0
    %302 = vmatpush1.msra.mxu0 0.0
    %303 = vmatprep.subr.mxu0 0.0
    %304 = vmatpush1.msra.mxu0 0.0
    %305 = vmatprep.subr.mxu0 0.0
    %306 = vmatpush1.msra.mxu0 0.0
    %307 = vmatprep.subr.mxu0 0.0
    %308 = vmatpush1.msra.mxu0 0.0
    %309 = vmatprep.subr.mxu0 0.0
    %310 = vmatpush1.msra.mxu0 0.0
    %311 = vmatprep.subr.mxu0 0.0
    %312 = vmatpush1.msra.mxu0 0.0
    %313 = vmatprep.subr.mxu0 0.0
    %314 = vmatpush1.msra.mxu0 0.0
    %315 = vmatprep.subr.mxu0 0.0
    %316 = vmatpush1.msra.mxu0 0.0
    %317 = vmatprep.subr.mxu0 0.0
    %318 = vmatpush1.msra.mxu0 0.0
    %319 = vmatprep.subr.mxu0 0.0
    %320 = vmatpush1.msra.mxu0 0.0
    %321 = vmatprep.subr.mxu0 0.0
    %322 = vmatpush1.msra.mxu0 0.0
    %323 = vmatprep.subr.mxu0 0.0
    %324 = vmatpush1.msra.mxu0 0.0
    %325 = vmatprep.subr.mxu0 0.0
    %326 = vmatpush1.msra.mxu0 0.0
    %327 = vmatprep.subr.mxu0 0.0
    %328 = vmatpush1.msra.mxu0 0.0
    %329 = vmatprep.subr.mxu0 0.0
    %330 = vmatpush1.msra.mxu0 0.0
    %331 = vmatprep.subr.mxu0 0.0
    %332 = vmatpush1.msra.mxu0 0.0
    %333 = vmatprep.subr.mxu0 0.0
    %334 = vmatpush1.msra.mxu0 0.0
    %335 = vmatprep.subr.mxu0 0.0
    %336 = vmatpush1.msra.mxu0 0.0
    %337 = vmatprep.subr.mxu0 0.0
    %338 = vmatpush1.msra.mxu0 0.0
    %339 = vmatprep.subr.mxu0 0.0
    %340 = vmatpush1.msra.mxu0 0.0
    %341 = vmatprep.subr.mxu0 0.0
    %342 = vmatpush1.msra.mxu0 0.0
    %343 = vmatprep.subr.mxu0 0.0
    %344 = vmatpush1.msra.mxu0 0.0
    %345 = vmatprep.subr.mxu0 0.0
    %346 = vmatpush1.msra.mxu0 0.0
    %347 = vmatprep.mubr.f32.mxu0 0.0
    %348 = vmatmul.mubr.f32.gmra.mrb[0].mxu0 %v274
    %v349 = vpop.f32.mrb[0].mxu0
    %v350 = vadd.f32 %v271, %v349
    %v351 = vpop.f32.mrb[0].mxu0
    %352 = vmatprep.mubr.f32.mxu0 0.0
    %353 = vmatmul.mubr.f32.gmra.mrb[0].mxu0 %v277
    %v354 = vpop.f32.mrb[0].mxu0
    %v355 = vadd.f32 %v271, %v354
    %v356 = vpop.f32.mrb[0].mxu0
    %357 = vdwg.mxu0
    %vm358 = vcmask 15360
    %v359 = vsel %vm358, %v350, -inf
    %360 = vmax.xlane.f32.xlu0 %v359
    %v361 = vpop.xlane.xlu0 %360
    %v362 = vsel %vm358, %v355, -inf
    %363 = vmax.xlane.f32.xlu0 %v362
    %v364 = vpop.xlane.xlu0 %363
    %v365 = vsub.f32 %v350, %v361
    %v366 = vsub.f32 %v355, %v364
    %v367 = vmul.f32 %v365, 1.442695
    %v368 = vpow.pop %v367
    %v369 = vmul.f32 %v366, 1.442695
    %v370 = vpow.pop %v369
    %v371 = vsel %vm358, %v368, 0.0
    %372 = vadd.xlane.f32.xlu0 %v371
    %v373 = vpop.xlane.xlu0 %372
    %v374 = vsel %vm358, %v370, 0.0
    %375 = vadd.xlane.f32.xlu0 %v374
    %v376 = vpop.xlane.xlu0 %375
    %v377 = vlog2.pop %v373
    %v378 = vmul.f32 %v377, 0.6931472
    %v379 = vlog2.pop %v376
    %v380 = vmul.f32 %v379, 0.6931472
    %v381 = vadd.f32 %v361, %v378
    %v382 = vadd.f32 %v364, %v380
    %v383 = vlaneseq
    %v384 = vand.u32 %v383, 127
    %385 = vset.pattern.permute.xlu0 0
    %386 = vperm.xlu0 %385, %v28
    %v387 = vpop.permute.xlu0 %386
    %388 = vset.pattern.permute.xlu0 0
    %389 = vperm.xlu0 %388, %v29
    %v390 = vpop.permute.xlu0 %389
    %vm391 = vcmp.eq.s32.totalorder %v384, %v387
    %vm392 = vcmp.eq.s32.totalorder %v384, %v390
    %v393 = vsel %vm391, 1, 0
    %v394 = vsel %vm392, 1, 0
    %v395 = vcvt.s32.f32 %v393
    %v396 = vcvt.s32.f32 %v394
    %v397 = vmul.f32 %v395, %v350
    %v398 = vmul.f32 %v396, %v355
    %v399 = vsel %vm358, %v397, 0.0
    %400 = vadd.xlane.f32.xlu0 %v399
    %v401 = vpop.xlane.xlu0 %400
    %v402 = vsel %vm358, %v398, 0.0
    %403 = vadd.xlane.f32.xlu0 %v402
    %v404 = vpop.xlane.xlu0 %403
    %v405 = vsub.f32 %v381, %v401
    %v406 = vsub.f32 %v382, %v404
    %407 = vst.msk [vmem:[%s5] sm:$0xff] %vm358, %v350
    %408 = vst.msk [vmem:[%s5 + $0x8] sm:$0xff] %vm358, %v355
    %409 = vst.msk [vmem:[#allocation2] sm:$0xff] %vm49, %v268
    %410 = vst.msk [vmem:[#allocation2 + $0x8] sm:$0xff] %vm49, %v269
    %vm411 = vcmask 7168
    %412 = vst.msk [vmem:[%s7] sm:$0xff] %vm411, %v405
    %413 = vst.msk [vmem:[%s7 + $0x8] sm:$0xff] %vm411, %v406
    // Predicated region
    $region22: #{tpu_custom_call.1} parent=1 // pred_check
      _
    $region23: #{tpu_custom_call.1} parent=1 // pred_check_branch
      %415 = sbr.rel (0) target = $region25
    $region24: #{tpu_custom_call.1} parent=1 // pred_region
      _
    $region25: #{tpu_custom_call.1} parent=1 // pred_fallthru
      _
    // Predicated region
    $region26: #{tpu_custom_call.1} parent=1 // pred_check
      _
    $region27: #{tpu_custom_call.1} parent=1 // pred_check_branch
      %417 = sbr.rel (0) target = $region29
    $region28: #{tpu_custom_call.1} parent=1 // pred_region
      %s419 = ssub.s32 256, 256
      %420 = vsyncadd [#allocation3], %s419
      %s421 = sshll.u32 [#allocation2], 4
      %s422 = int_to_ptr.vmem [resolvable:$true] %s421
      %427 = dma.vmem_to_hbm [thread:$0]  %s422, 256, %s6, [#allocation3], 128, 128, 8
    $region29: #{tpu_custom_call.1} parent=1 // pred_fallthru
      _
    // Predicated region
    $region30: #{tpu_custom_call.1} parent=1 // pred_check
      _
    $region31: #{tpu_custom_call.1} parent=1 // pred_check_branch
      %429 = sbr.rel (0) target = $region33
    $region32: #{tpu_custom_call.1} parent=1 // pred_region
      _
    $region33: #{tpu_custom_call.1} parent=1 // pred_fallthru
      _
    // Predicated region
    $region34: #{tpu_custom_call.1} parent=1 // pred_check
      _
    $region35: #{tpu_custom_call.1} parent=1 // pred_check_branch
      %431 = sbr.rel (0) target = $region37
    $region36: #{tpu_custom_call.1} parent=1 // pred_region
      _
    $region37: #{tpu_custom_call.1} parent=1 // pred_fallthru
      _
    // Predicated region
    $region38: #{tpu_custom_call.1} parent=1 // pred_check
      _
    $region39: #{tpu_custom_call.1} parent=1 // pred_check_branch
      %433 = sbr.rel (0) target = $region41
    $region40: #{tpu_custom_call.1} parent=1 // pred_region
      %434 = dma.done [#allocation3], 256
    $region41: #{tpu_custom_call.1} parent=1 // pred_fallthru
      _
    // Predicated region
    $region42: #{tpu_custom_call.1} parent=1 // pred_check
      _
    $region43: #{tpu_custom_call.1} parent=1 // pred_check_branch
      %436 = sbr.rel (0) target = $region45
    $region44: #{tpu_custom_call.1} parent=1 // pred_region
      _
    $region45: #{tpu_custom_call.1} parent=1 // pred_fallthru
      _
    %437 = vsyncpa [#allocation3], 1

</llo_original>
